<compile_context>
chip_gen: v5e
topology: v5e:2x2
jax: 0.10.0
libtpu: 0.0.40
codegen_flags: <defaults>
</compile_context>

<pallas_src>
import functools

import jax
import jax.numpy as jnp
from jax.experimental import pallas as pl
from jax.experimental.pallas import tpu as pltpu


def _block_kernel(x_ref, m_ref, w1_ref, b1_ref, w2_ref, b2_ref, o_ref, *, H, W, K):
    """One batch element per grid step; activations in lane-dense (C, H*W)."""
    pad = K // 2

    x = x_ref[0]                                 # (Cin, H*W) f32, lane-dense
    masks = m_ref[...]                           # (K*K, H*W) bf16 in {0, 1}

    def im2col(a):
        # a: (C, H*W) bf16 -> (K*K*C, H*W) tap-major im2col patches.
        cols = []
        for ky in range(K):
            for kx in range(K):
                dy, dx = ky - pad, kx - pad
                d = dy * W + dx                  # flat source offset
                tap = ky * K + kx
                if d == 0:
                    cols.append(a)               # centre tap: no shift, no mask
                else:
                    # shifted[c, i] = a[c, i + d]; out-of-image sources zeroed.
                    shifted = jnp.roll(a, -d, axis=1)
                    cols.append(shifted * masks[tap:tap + 1])
        return jnp.concatenate(cols, axis=0)

    # ---- conv1 (Cin -> Cb): one fused matmul, bf16 operands, f32 accumulate.
    p1 = im2col(x.astype(jnp.bfloat16))                              # (K*K*Cin, HW)
    h = jnp.dot(w1_ref[...], p1, preferred_element_type=jnp.float32)  # (Cb, HW)
    h = jnp.maximum(h + b1_ref[...], 0.0)                            # ReLU

    # ---- conv2 (Cb -> Cin): res_scale already folded into w2 / b2.
    p2 = im2col(h.astype(jnp.bfloat16))                              # (K*K*Cb, HW)
    res = jnp.dot(w2_ref[...], p2, preferred_element_type=jnp.float32)  # (Cin, HW)
    res = res + b2_ref[...]

    # residual add (f32) and lane-dense store
    o_ref[0] = (res + x).astype(o_ref.dtype)


def block_forward(x_nchw, w1, b1, w2, b2, *, res_scale=1.0):
    """x_nchw: (N, Cin, H, W) f32.  w1: (Cb, Cin, K, K), w2: (Cin, Cb, K, K)."""
    N, Cin, H, W = x_nchw.shape
    Cb, _, K, _ = w1.shape
    pad = K // 2
    HW = H * W

    # NCHW -> (N, C, H*W): pure reshape, no transpose, no padded copy.
    x_flat = x_nchw.reshape(N, Cin, HW).astype(jnp.float32)

    # Fold res_scale into conv2 (free: merges with the weight-norm fold).
    w2s = w2 * res_scale
    b2s = b2 * res_scale

    # (out, in, kh, kw) -> (out, kh, kw, in) -> (out, K*K*in), tap-major /
    # channel-minor rows matching the im2col layout built in the kernel.
    w1_mat = jnp.transpose(w1, (0, 2, 3, 1)).reshape(Cb, K * K * Cin).astype(jnp.bfloat16)
    w2_mat = jnp.transpose(w2s, (0, 2, 3, 1)).reshape(Cin, K * K * Cb).astype(jnp.bfloat16)
    b1_col = b1.reshape(Cb, 1).astype(jnp.float32)
    b2_col = b2s.reshape(Cin, 1).astype(jnp.float32)

    # Per-tap validity masks (shared by both convs): mask[tap, y*W+x] == 1
    # iff the shifted source pixel (y+dy, x+dx) lies inside the image.
    yy, xx = jnp.meshgrid(jnp.arange(H), jnp.arange(W), indexing="ij")
    taps = []
    for ky in range(K):
        for kx in range(K):
            dy, dx = ky - pad, kx - pad
            valid = ((yy + dy >= 0) & (yy + dy < H) &
                     (xx + dx >= 0) & (xx + dx < W))
            taps.append(valid.reshape(HW))
    masks = jnp.stack(taps, axis=0).astype(jnp.bfloat16)             # (K*K, HW)

    kernel = functools.partial(_block_kernel, H=H, W=W, K=K)

    out_flat = pl.pallas_call(
        kernel,
        out_shape=jax.ShapeDtypeStruct((N, Cin, HW), jnp.float32),
        grid_spec=pltpu.PrefetchScalarGridSpec(
            num_scalar_prefetch=0,
            grid=(N,),
            in_specs=[
                pl.BlockSpec((1, Cin, HW), lambda b: (b, 0, 0)),       # x
                pl.BlockSpec((K * K, HW), lambda b: (0, 0)),           # masks
                pl.BlockSpec((Cb, K * K * Cin), lambda b: (0, 0)),     # w1
                pl.BlockSpec((Cb, 1), lambda b: (0, 0)),               # b1
                pl.BlockSpec((Cin, K * K * Cb), lambda b: (0, 0)),     # w2 (scaled)
                pl.BlockSpec((Cin, 1), lambda b: (0, 0)),              # b2 (scaled)
            ],
            out_specs=pl.BlockSpec((1, Cin, HW), lambda b: (b, 0, 0)),
        ),
        compiler_params=pltpu.CompilerParams(dimension_semantics=("parallel",)),
    )(x_flat, masks, w1_mat, b1_col, w2_mat, b2_col)

    # (N, C, H*W) -> NCHW: pure reshape.
    return out_flat.reshape(N, Cin, H, W)


def _weight_norm(v, g):
    # PyTorch weight_norm default dim=0: w = g * v / ||v||_(over dims 1,2,3)
    norm = jnp.sqrt(jnp.sum(v * v, axis=(1, 2, 3), keepdims=True))
    return g.reshape(-1, 1, 1, 1) * v / norm


def _reference(x, w1, b1, w2, b2, res_scale):
    dn = jax.lax.conv_dimension_numbers(x.shape, w1.shape, ("NCHW", "OIHW", "NCHW"))
    h = jax.lax.conv_general_dilated(x, w1, (1, 1), "SAME", dimension_numbers=dn)
    h = h + b1.reshape(1, -1, 1, 1)
    h = jnp.maximum(h, 0.0)
    dn2 = jax.lax.conv_dimension_numbers(h.shape, w2.shape, ("NCHW", "OIHW", "NCHW"))
    r = jax.lax.conv_general_dilated(h, w2, (1, 1), "SAME", dimension_numbers=dn2)
    r = r + b2.reshape(1, -1, 1, 1)
    return r * res_scale + x


if __name__ == "__main__":
    # small shapes consistent with the module
    N, n_feats, H, W = 2, 4, 16, 16
    block_feats, kernel_size = 8, 3
    res_scale = 1.0

    key = jax.random.PRNGKey(0)
    k1, k2, k3, k4, k5, k6, kx = jax.random.split(key, 7)

    # deterministic parameter init (weight-norm reparameterization: v and g)
    v1 = jax.random.normal(k1, (block_feats, n_feats, kernel_size, kernel_size),
                           jnp.float32) * 0.1
    g1 = 1.0 + 0.05 * jax.random.normal(k2, (block_feats,), jnp.float32)
    b1 = 0.01 * jax.random.normal(k3, (block_feats,), jnp.float32)
    v2 = jax.random.normal(k4, (n_feats, block_feats, kernel_size, kernel_size),
                           jnp.float32) * 0.1
    g2 = 1.0 + 0.05 * jax.random.normal(k5, (n_feats,), jnp.float32)
    b2 = 0.01 * jax.random.normal(k6, (n_feats,), jnp.float32)

    w1 = _weight_norm(v1, g1)
    w2 = _weight_norm(v2, g2)

    x = jax.random.normal(kx, (N, n_feats, H, W), jnp.float32)

    fwd = jax.jit(functools.partial(block_forward, res_scale=res_scale))
    out = jax.block_until_ready(fwd(x, w1, b1, w2, b2))

    ref = _reference(x, w1, b1, w2, b2, res_scale)
    assert out.shape == x.shape
    # bf16 MXU operands (f32 accumulation, f32 residual) vs f32 reference.
    assert jnp.allclose(out, ref, atol=5e-2, rtol=5e-2), "mismatch vs reference"

    print("KERNEL_OK")
</pallas_src>

<mosaic_0001>
module attributes {stable_mosaic.version = 11 : i64} {
  func.func @_block_kernel(%arg0: i32, %arg1: memref<1x4x256xf32, #tpu.memory_space<vmem>>, %arg2: memref<9x256xbf16, #tpu.memory_space<vmem>>, %arg3: memref<8x36xbf16, #tpu.memory_space<vmem>>, %arg4: memref<8x1xf32, #tpu.memory_space<vmem>>, %arg5: memref<4x72xbf16, #tpu.memory_space<vmem>>, %arg6: memref<4x1xf32, #tpu.memory_space<vmem>>, %arg7: memref<1x4x256xf32, #tpu.memory_space<vmem>>) attributes {dimension_semantics = [#tpu.dimension_semantics<parallel>], iteration_bounds = array<i64: 2>, scalar_prefetch = 0 : i64, scratch_operands = 0 : i64, tpu.core_type = #tpu.core_type<tc>, window_params = [{transform_indices = @transform_0, window_bounds = array<i64: 1, 4, 256>}, {pipeline_mode = #tpu.pipeline_mode<synchronous>, transform_indices = @transform_1, window_bounds = array<i64: 9, 256>}, {pipeline_mode = #tpu.pipeline_mode<synchronous>, transform_indices = @transform_2, window_bounds = array<i64: 8, 36>}, {pipeline_mode = #tpu.pipeline_mode<synchronous>, transform_indices = @transform_3, window_bounds = array<i64: 8, 1>}, {pipeline_mode = #tpu.pipeline_mode<synchronous>, transform_indices = @transform_4, window_bounds = array<i64: 4, 72>}, {pipeline_mode = #tpu.pipeline_mode<synchronous>, transform_indices = @transform_5, window_bounds = array<i64: 4, 1>}, {transform_indices = @transform_6, window_bounds = array<i64: 1, 4, 256>}]} {
    %c0 = arith.constant 0 : index
    %c0_0 = arith.constant 0 : index
    %c0_1 = arith.constant 0 : index
    %0 = vector.load %arg1[%c0, %c0_0, %c0_1] : memref<1x4x256xf32, #tpu.memory_space<vmem>>, vector<1x4x256xf32>
    %1 = vector.shape_cast %0 : vector<1x4x256xf32> to vector<4x256xf32>
    %c0_2 = arith.constant 0 : index
    %c0_3 = arith.constant 0 : index
    %2 = vector.load %arg2[%c0_2, %c0_3] : memref<9x256xbf16, #tpu.memory_space<vmem>>, vector<9x256xbf16>
    %3 = arith.truncf %1 : vector<4x256xf32> to vector<4x256xbf16>
    %4 = vector.extract_strided_slice %3 {offsets = [0, 239], sizes = [4, 17], strides = [1, 1]} : vector<4x256xbf16> to vector<4x17xbf16>
    %5 = vector.extract_strided_slice %3 {offsets = [0, 0], sizes = [4, 239], strides = [1, 1]} : vector<4x256xbf16> to vector<4x239xbf16>
    %6 = tpu.concatenate %4, %5 in 1 : vector<4x17xbf16>, vector<4x239xbf16> -> vector<4x256xbf16>
    %7 = vector.extract_strided_slice %2 {offsets = [0, 0], sizes = [1, 256], strides = [1, 1]} : vector<9x256xbf16> to vector<1x256xbf16>
    %8 = vector.broadcast %7 : vector<1x256xbf16> to vector<4x256xbf16>
    %9 = arith.mulf %6, %8 : vector<4x256xbf16>
    %10 = vector.extract_strided_slice %3 {offsets = [0, 240], sizes = [4, 16], strides = [1, 1]} : vector<4x256xbf16> to vector<4x16xbf16>
    %11 = vector.extract_strided_slice %3 {offsets = [0, 0], sizes = [4, 240], strides = [1, 1]} : vector<4x256xbf16> to vector<4x240xbf16>
    %12 = tpu.concatenate %10, %11 in 1 : vector<4x16xbf16>, vector<4x240xbf16> -> vector<4x256xbf16>
    %13 = vector.extract_strided_slice %2 {offsets = [1, 0], sizes = [1, 256], strides = [1, 1]} : vector<9x256xbf16> to vector<1x256xbf16>
    %14 = vector.broadcast %13 : vector<1x256xbf16> to vector<4x256xbf16>
    %15 = arith.mulf %12, %14 : vector<4x256xbf16>
    %16 = vector.extract_strided_slice %3 {offsets = [0, 241], sizes = [4, 15], strides = [1, 1]} : vector<4x256xbf16> to vector<4x15xbf16>
    %17 = vector.extract_strided_slice %3 {offsets = [0, 0], sizes = [4, 241], strides = [1, 1]} : vector<4x256xbf16> to vector<4x241xbf16>
    %18 = tpu.concatenate %16, %17 in 1 : vector<4x15xbf16>, vector<4x241xbf16> -> vector<4x256xbf16>
    %19 = vector.extract_strided_slice %2 {offsets = [2, 0], sizes = [1, 256], strides = [1, 1]} : vector<9x256xbf16> to vector<1x256xbf16>
    %20 = vector.broadcast %19 : vector<1x256xbf16> to vector<4x256xbf16>
    %21 = arith.mulf %18, %20 : vector<4x256xbf16>
    %22 = vector.extract_strided_slice %3 {offsets = [0, 255], sizes = [4, 1], strides = [1, 1]} : vector<4x256xbf16> to vector<4x1xbf16>
    %23 = vector.extract_strided_slice %3 {offsets = [0, 0], sizes = [4, 255], strides = [1, 1]} : vector<4x256xbf16> to vector<4x255xbf16>
    %24 = tpu.concatenate %22, %23 in 1 : vector<4x1xbf16>, vector<4x255xbf16> -> vector<4x256xbf16>
    %25 = vector.extract_strided_slice %2 {offsets = [3, 0], sizes = [1, 256], strides = [1, 1]} : vector<9x256xbf16> to vector<1x256xbf16>
    %26 = vector.broadcast %25 : vector<1x256xbf16> to vector<4x256xbf16>
    %27 = arith.mulf %24, %26 : vector<4x256xbf16>
    %28 = vector.extract_strided_slice %3 {offsets = [0, 1], sizes = [4, 255], strides = [1, 1]} : vector<4x256xbf16> to vector<4x255xbf16>
    %29 = vector.extract_strided_slice %3 {offsets = [0, 0], sizes = [4, 1], strides = [1, 1]} : vector<4x256xbf16> to vector<4x1xbf16>
    %30 = tpu.concatenate %28, %29 in 1 : vector<4x255xbf16>, vector<4x1xbf16> -> vector<4x256xbf16>
    %31 = vector.extract_strided_slice %2 {offsets = [5, 0], sizes = [1, 256], strides = [1, 1]} : vector<9x256xbf16> to vector<1x256xbf16>
    %32 = vector.broadcast %31 : vector<1x256xbf16> to vector<4x256xbf16>
    %33 = arith.mulf %30, %32 : vector<4x256xbf16>
    %34 = vector.extract_strided_slice %3 {offsets = [0, 15], sizes = [4, 241], strides = [1, 1]} : vector<4x256xbf16> to vector<4x241xbf16>
    %35 = vector.extract_strided_slice %3 {offsets = [0, 0], sizes = [4, 15], strides = [1, 1]} : vector<4x256xbf16> to vector<4x15xbf16>
    %36 = tpu.concatenate %34, %35 in 1 : vector<4x241xbf16>, vector<4x15xbf16> -> vector<4x256xbf16>
    %37 = vector.extract_strided_slice %2 {offsets = [6, 0], sizes = [1, 256], strides = [1, 1]} : vector<9x256xbf16> to vector<1x256xbf16>
    %38 = vector.broadcast %37 : vector<1x256xbf16> to vector<4x256xbf16>
    %39 = arith.mulf %36, %38 : vector<4x256xbf16>
    %40 = vector.extract_strided_slice %3 {offsets = [0, 16], sizes = [4, 240], strides = [1, 1]} : vector<4x256xbf16> to vector<4x240xbf16>
    %41 = vector.extract_strided_slice %3 {offsets = [0, 0], sizes = [4, 16], strides = [1, 1]} : vector<4x256xbf16> to vector<4x16xbf16>
    %42 = tpu.concatenate %40, %41 in 1 : vector<4x240xbf16>, vector<4x16xbf16> -> vector<4x256xbf16>
    %43 = vector.extract_strided_slice %2 {offsets = [7, 0], sizes = [1, 256], strides = [1, 1]} : vector<9x256xbf16> to vector<1x256xbf16>
    %44 = vector.broadcast %43 : vector<1x256xbf16> to vector<4x256xbf16>
    %45 = arith.mulf %42, %44 : vector<4x256xbf16>
    %46 = vector.extract_strided_slice %3 {offsets = [0, 17], sizes = [4, 239], strides = [1, 1]} : vector<4x256xbf16> to vector<4x239xbf16>
    %47 = vector.extract_strided_slice %3 {offsets = [0, 0], sizes = [4, 17], strides = [1, 1]} : vector<4x256xbf16> to vector<4x17xbf16>
    %48 = tpu.concatenate %46, %47 in 1 : vector<4x239xbf16>, vector<4x17xbf16> -> vector<4x256xbf16>
    %49 = vector.extract_strided_slice %2 {offsets = [8, 0], sizes = [1, 256], strides = [1, 1]} : vector<9x256xbf16> to vector<1x256xbf16>
    %50 = vector.broadcast %49 : vector<1x256xbf16> to vector<4x256xbf16>
    %51 = arith.mulf %48, %50 : vector<4x256xbf16>
    %52 = tpu.concatenate %9, %15, %21, %27, %3, %33, %39, %45, %51 in 0 : vector<4x256xbf16>, vector<4x256xbf16>, vector<4x256xbf16>, vector<4x256xbf16>, vector<4x256xbf16>, vector<4x256xbf16>, vector<4x256xbf16>, vector<4x256xbf16>, vector<4x256xbf16> -> vector<36x256xbf16>
    %c0_4 = arith.constant 0 : index
    %c0_5 = arith.constant 0 : index
    %53 = vector.load %arg3[%c0_4, %c0_5] : memref<8x36xbf16, #tpu.memory_space<vmem>>, vector<8x36xbf16>
    %cst = arith.constant dense<0.000000e+00> : vector<8x256xf32>
    %54 = tpu.matmul %53, %52, %cst {dimension_numbers = #tpu.dot_dimension_numbers<[1], [0], [0], [1], [0, 0, 1, 1], [], []>} : vector<8x36xbf16>, vector<36x256xbf16>, vector<8x256xf32> -> vector<8x256xf32>
    %c0_6 = arith.constant 0 : index
    %c0_7 = arith.constant 0 : index
    %55 = vector.load %arg4[%c0_6, %c0_7] : memref<8x1xf32, #tpu.memory_space<vmem>>, vector<8x1xf32>
    %56 = vector.broadcast %55 : vector<8x1xf32> to vector<8x256xf32>
    %57 = arith.addf %54, %56 : vector<8x256xf32>
    %cst_8 = arith.constant 0.000000e+00 : f32
    %58 = vector.broadcast %cst_8 : f32 to vector<8x256xf32>
    %59 = arith.maximumf %57, %58 : vector<8x256xf32>
    %60 = arith.truncf %59 : vector<8x256xf32> to vector<8x256xbf16>
    %61 = vector.extract_strided_slice %60 {offsets = [0, 239], sizes = [8, 17], strides = [1, 1]} : vector<8x256xbf16> to vector<8x17xbf16>
    %62 = vector.extract_strided_slice %60 {offsets = [0, 0], sizes = [8, 239], strides = [1, 1]} : vector<8x256xbf16> to vector<8x239xbf16>
    %63 = tpu.concatenate %61, %62 in 1 : vector<8x17xbf16>, vector<8x239xbf16> -> vector<8x256xbf16>
    %64 = vector.extract_strided_slice %2 {offsets = [0, 0], sizes = [1, 256], strides = [1, 1]} : vector<9x256xbf16> to vector<1x256xbf16>
    %65 = vector.broadcast %64 : vector<1x256xbf16> to vector<8x256xbf16>
    %66 = arith.mulf %63, %65 : vector<8x256xbf16>
    %67 = vector.extract_strided_slice %60 {offsets = [0, 240], sizes = [8, 16], strides = [1, 1]} : vector<8x256xbf16> to vector<8x16xbf16>
    %68 = vector.extract_strided_slice %60 {offsets = [0, 0], sizes = [8, 240], strides = [1, 1]} : vector<8x256xbf16> to vector<8x240xbf16>
    %69 = tpu.concatenate %67, %68 in 1 : vector<8x16xbf16>, vector<8x240xbf16> -> vector<8x256xbf16>
    %70 = vector.extract_strided_slice %2 {offsets = [1, 0], sizes = [1, 256], strides = [1, 1]} : vector<9x256xbf16> to vector<1x256xbf16>
    %71 = vector.broadcast %70 : vector<1x256xbf16> to vector<8x256xbf16>
    %72 = arith.mulf %69, %71 : vector<8x256xbf16>
    %73 = vector.extract_strided_slice %60 {offsets = [0, 241], sizes = [8, 15], strides = [1, 1]} : vector<8x256xbf16> to vector<8x15xbf16>
    %74 = vector.extract_strided_slice %60 {offsets = [0, 0], sizes = [8, 241], strides = [1, 1]} : vector<8x256xbf16> to vector<8x241xbf16>
    %75 = tpu.concatenate %73, %74 in 1 : vector<8x15xbf16>, vector<8x241xbf16> -> vector<8x256xbf16>
    %76 = vector.extract_strided_slice %2 {offsets = [2, 0], sizes = [1, 256], strides = [1, 1]} : vector<9x256xbf16> to vector<1x256xbf16>
    %77 = vector.broadcast %76 : vector<1x256xbf16> to vector<8x256xbf16>
    %78 = arith.mulf %75, %77 : vector<8x256xbf16>
    %79 = vector.extract_strided_slice %60 {offsets = [0, 255], sizes = [8, 1], strides = [1, 1]} : vector<8x256xbf16> to vector<8x1xbf16>
    %80 = vector.extract_strided_slice %60 {offsets = [0, 0], sizes = [8, 255], strides = [1, 1]} : vector<8x256xbf16> to vector<8x255xbf16>
    %81 = tpu.concatenate %79, %80 in 1 : vector<8x1xbf16>, vector<8x255xbf16> -> vector<8x256xbf16>
    %82 = vector.extract_strided_slice %2 {offsets = [3, 0], sizes = [1, 256], strides = [1, 1]} : vector<9x256xbf16> to vector<1x256xbf16>
    %83 = vector.broadcast %82 : vector<1x256xbf16> to vector<8x256xbf16>
    %84 = arith.mulf %81, %83 : vector<8x256xbf16>
    %85 = vector.extract_strided_slice %60 {offsets = [0, 1], sizes = [8, 255], strides = [1, 1]} : vector<8x256xbf16> to vector<8x255xbf16>
    %86 = vector.extract_strided_slice %60 {offsets = [0, 0], sizes = [8, 1], strides = [1, 1]} : vector<8x256xbf16> to vector<8x1xbf16>
    %87 = tpu.concatenate %85, %86 in 1 : vector<8x255xbf16>, vector<8x1xbf16> -> vector<8x256xbf16>
    %88 = vector.extract_strided_slice %2 {offsets = [5, 0], sizes = [1, 256], strides = [1, 1]} : vector<9x256xbf16> to vector<1x256xbf16>
    %89 = vector.broadcast %88 : vector<1x256xbf16> to vector<8x256xbf16>
    %90 = arith.mulf %87, %89 : vector<8x256xbf16>
    %91 = vector.extract_strided_slice %60 {offsets = [0, 15], sizes = [8, 241], strides = [1, 1]} : vector<8x256xbf16> to vector<8x241xbf16>
    %92 = vector.extract_strided_slice %60 {offsets = [0, 0], sizes = [8, 15], strides = [1, 1]} : vector<8x256xbf16> to vector<8x15xbf16>
    %93 = tpu.concatenate %91, %92 in 1 : vector<8x241xbf16>, vector<8x15xbf16> -> vector<8x256xbf16>
    %94 = vector.extract_strided_slice %2 {offsets = [6, 0], sizes = [1, 256], strides = [1, 1]} : vector<9x256xbf16> to vector<1x256xbf16>
    %95 = vector.broadcast %94 : vector<1x256xbf16> to vector<8x256xbf16>
    %96 = arith.mulf %93, %95 : vector<8x256xbf16>
    %97 = vector.extract_strided_slice %60 {offsets = [0, 16], sizes = [8, 240], strides = [1, 1]} : vector<8x256xbf16> to vector<8x240xbf16>
    %98 = vector.extract_strided_slice %60 {offsets = [0, 0], sizes = [8, 16], strides = [1, 1]} : vector<8x256xbf16> to vector<8x16xbf16>
    %99 = tpu.concatenate %97, %98 in 1 : vector<8x240xbf16>, vector<8x16xbf16> -> vector<8x256xbf16>
    %100 = vector.extract_strided_slice %2 {offsets = [7, 0], sizes = [1, 256], strides = [1, 1]} : vector<9x256xbf16> to vector<1x256xbf16>
    %101 = vector.broadcast %100 : vector<1x256xbf16> to vector<8x256xbf16>
    %102 = arith.mulf %99, %101 : vector<8x256xbf16>
    %103 = vector.extract_strided_slice %60 {offsets = [0, 17], sizes = [8, 239], strides = [1, 1]} : vector<8x256xbf16> to vector<8x239xbf16>
    %104 = vector.extract_strided_slice %60 {offsets = [0, 0], sizes = [8, 17], strides = [1, 1]} : vector<8x256xbf16> to vector<8x17xbf16>
    %105 = tpu.concatenate %103, %104 in 1 : vector<8x239xbf16>, vector<8x17xbf16> -> vector<8x256xbf16>
    %106 = vector.extract_strided_slice %2 {offsets = [8, 0], sizes = [1, 256], strides = [1, 1]} : vector<9x256xbf16> to vector<1x256xbf16>
    %107 = vector.broadcast %106 : vector<1x256xbf16> to vector<8x256xbf16>
    %108 = arith.mulf %105, %107 : vector<8x256xbf16>
    %109 = tpu.concatenate %66, %72, %78, %84, %60, %90, %96, %102, %108 in 0 : vector<8x256xbf16>, vector<8x256xbf16>, vector<8x256xbf16>, vector<8x256xbf16>, vector<8x256xbf16>, vector<8x256xbf16>, vector<8x256xbf16>, vector<8x256xbf16>, vector<8x256xbf16> -> vector<72x256xbf16>
    %c0_9 = arith.constant 0 : index
    %c0_10 = arith.constant 0 : index
    %110 = vector.load %arg5[%c0_9, %c0_10] : memref<4x72xbf16, #tpu.memory_space<vmem>>, vector<4x72xbf16>
    %cst_11 = arith.constant dense<0.000000e+00> : vector<4x256xf32>
    %111 = tpu.matmul %110, %109, %cst_11 {dimension_numbers = #tpu.dot_dimension_numbers<[1], [0], [0], [1], [0, 0, 1, 1], [], []>} : vector<4x72xbf16>, vector<72x256xbf16>, vector<4x256xf32> -> vector<4x256xf32>
    %c0_12 = arith.constant 0 : index
    %c0_13 = arith.constant 0 : index
    %112 = vector.load %arg6[%c0_12, %c0_13] : memref<4x1xf32, #tpu.memory_space<vmem>>, vector<4x1xf32>
    %113 = vector.broadcast %112 : vector<4x1xf32> to vector<4x256xf32>
    %114 = arith.addf %111, %113 : vector<4x256xf32>
    %115 = arith.addf %114, %1 : vector<4x256xf32>
    %c0_14 = arith.constant 0 : index
    %c0_15 = arith.constant 0 : index
    %c0_16 = arith.constant 0 : index
    %116 = vector.load %arg7[%c0_14, %c0_15, %c0_16] : memref<1x4x256xf32, #tpu.memory_space<vmem>>, vector<1x4x256xf32>
    %117 = vector.shape_cast %116 : vector<1x4x256xf32> to vector<4x256xf32>
    %118 = vector.shape_cast %115 : vector<4x256xf32> to vector<1x4x256xf32>
    tpu.vector_store %arg7[%c0_14, %c0_15, %c0_16], %118 {strides = array<i32>} : memref<1x4x256xf32, #tpu.memory_space<vmem>>, vector<1x4x256xf32>,
    return
  }
  func.func @transform_0(%arg0: i32) -> (i32, i32, i32) {
    %c0_i32 = arith.constant 0 : i32
    %c0_i32_0 = arith.constant 0 : i32
    %c0_i32_1 = arith.constant 0 : i32
    return %arg0, %c0_i32, %c0_i32_0 : i32, i32, i32
  }
  func.func @transform_1(%arg0: i32) -> (i32, i32) {
    %c0_i32 = arith.constant 0 : i32
    %c0_i32_0 = arith.constant 0 : i32
    %c0_i32_1 = arith.constant 0 : i32
    return %c0_i32, %c0_i32_0 : i32, i32
  }
  func.func @transform_2(%arg0: i32) -> (i32, i32) {
    %c0_i32 = arith.constant 0 : i32
    %c0_i32_0 = arith.constant 0 : i32
    %c0_i32_1 = arith.constant 0 : i32
    return %c0_i32, %c0_i32_0 : i32, i32
  }
  func.func @transform_3(%arg0: i32) -> (i32, i32) {
    %c0_i32 = arith.constant 0 : i32
    %c0_i32_0 = arith.constant 0 : i32
    %c0_i32_1 = arith.constant 0 : i32
    return %c0_i32, %c0_i32_0 : i32, i32
  }
  func.func @transform_4(%arg0: i32) -> (i32, i32) {
    %c0_i32 = arith.constant 0 : i32
    %c0_i32_0 = arith.constant 0 : i32
    %c0_i32_1 = arith.constant 0 : i32
    return %c0_i32, %c0_i32_0 : i32, i32
  }
  func.func @transform_5(%arg0: i32) -> (i32, i32) {
    %c0_i32 = arith.constant 0 : i32
    %c0_i32_0 = arith.constant 0 : i32
    %c0_i32_1 = arith.constant 0 : i32
    return %c0_i32, %c0_i32_0 : i32, i32
  }
  func.func @transform_6(%arg0: i32) -> (i32, i32, i32) {
    %c0_i32 = arith.constant 0 : i32
    %c0_i32_0 = arith.constant 0 : i32
    %c0_i32_1 = arith.constant 0 : i32
    return %arg0, %c0_i32, %c0_i32_0 : i32, i32, i32
  }
}

</mosaic_0001>

<llo_original>
// kernel: block_forward.1
$region0: #{block_forward.1}
  #allocation0 [shape = 'u32[]', space=smem, size = 0x4, offset = 0x4, fixed_abs, tag = 'smem constant byte address 0x4 - core index']
  #allocation1 [shape = 'u32[72,128]{1,0:T(1,128)}', space=vmem, size = 0x9000, scoped, tag = 'internal scratch']
  %s0 = inlined_call_operand.vmem [shape: f32[2,4,256], index: 0, kind: input, shape index: {}]
  %s1 = inlined_call_operand.vmem [shape: bf16[9,256], index: 1, kind: input, shape index: {}]
  %s2 = inlined_call_operand.vmem [shape: bf16[8,36], index: 2, kind: input, shape index: {}]
  %s3 = inlined_call_operand.vmem [shape: f32[8,1], index: 3, kind: input, shape index: {}]
  %s4 = inlined_call_operand.vmem [shape: bf16[4,72], index: 4, kind: input, shape index: {}]
  %s5 = inlined_call_operand.vmem [shape: f32[4,1], index: 5, kind: input, shape index: {}]
  %s6 = inlined_call_operand.vmem [shape: f32[2,4,256], index: 6, kind: output, shape index: {}]
  %s7 = sld [smem:[#allocation0]]
  $region57: #{block_forward.1} parent=0
    _
  %s9 = ssub.s32 1, %s7
  %s10 = scalar_select 0, %s9, %s7
  loop: start=0, step=1, limit=4
  $region2: #{block_forward.1} parent=0 // loop_pre_header
    _
  $region3: #{block_forward.1} parent=0 // loop_header
    %s12 = sphi 0, %s16
    %p13 = scmp.ge.s32.totalorder %s12, 4
    %s22 = sphi 0, %s24
    %s25 = sphi 0, %s22
    %s26 = sphi 0, %s25
    %s42 = sphi 0, %s26
    %s46 = sphi 0, %s46
    %s48 = sphi 0, %s46
    %s49 = sphi 0, %s48
    %s63 = sphi 0, %s49
    %s67 = sphi 0, %s67
    %s69 = sphi 0, %s67
    %s70 = sphi 0, %s69
    %s84 = sphi 0, %s70
    %s88 = sphi 0, %s88
    %s90 = sphi 0, %s88
    %s91 = sphi 0, %s90
    %s105 = sphi 0, %s91
    %s109 = sphi 0, %s109
    %s111 = sphi 0, %s109
    %s112 = sphi 0, %s111
    %s126 = sphi 0, %s112
    %s130 = sphi 0, %s130
    %s132 = sphi 0, %s130
    %s133 = sphi 0, %s132
    %s147 = sphi 0, %s133
    %s153 = sphi 0, %s155
    %s156 = sphi 0, %s153
    %s157 = sphi 0, %s156
    %s173 = sphi 0, %s157
  $region4: #{block_forward.1} parent=0 // loop_header_branch
    %15 = sbr.rel (%p13) target = $region8
  $region5: #{block_forward.1} parent=0 // loop_body
    %s17 = ssub.s32 %s12, 1
    %s18 = ssub.s32 %s12, 2
    %s19 = sadd.s32 %s12, 1
    %s20 = ssub.s32 %s12, %s19
    %p21 = scmp.eq.s32.totalorder %s20, 0
    %s23 = sadd.s32 %s22, 1
    %s24 = scalar_select %p21, %s22, %s23
    %p27 = pneg %p21
    %p28 = scmp.eq.s32.totalorder %s12, 1
    %p29 = por %p27, %p28
    %p30 = scmp.ne.s32.totalorder %s22, %s25
    %p31 = scmp.eq.s32.totalorder %s12, 0
    %p32 = por %p30, %p31
    %p33 = scmp.ne.s32.totalorder %s22, %s25
    %p34 = scmp.eq.s32.totalorder %s17, 1
    %p35 = por %p33, %p34
    %p36 = scmp.ne.s32.totalorder %s25, %s26
    %p37 = scmp.eq.s32.totalorder %s17, 0
    %p38 = por %p36, %p37
    %p39 = scmp.ne.s32.totalorder %s25, %s26
    %p40 = scmp.eq.s32.totalorder %s18, 1
    %p41 = por %p39, %p40
    %p43 = scmp.ne.s32.totalorder %s26, %s42
    %p44 = scmp.eq.s32.totalorder %s18, 0
    %p45 = por %p43, %p44
    %s47 = sadd.s32 %s46, 1
    %p50 = scmp.eq.s32.totalorder %s12, 1
    %p51 = scmp.ne.s32.totalorder %s46, %s48
    %p52 = scmp.eq.s32.totalorder %s12, 0
    %p53 = por %p51, %p52
    %p54 = scmp.ne.s32.totalorder %s46, %s48
    %p55 = scmp.eq.s32.totalorder %s17, 1
    %p56 = por %p54, %p55
    %p57 = scmp.ne.s32.totalorder %s48, %s49
    %p58 = scmp.eq.s32.totalorder %s17, 0
    %p59 = por %p57, %p58
    %p60 = scmp.ne.s32.totalorder %s48, %s49
    %p61 = scmp.eq.s32.totalorder %s18, 1
    %p62 = por %p60, %p61
    %p64 = scmp.ne.s32.totalorder %s49, %s63
    %p65 = scmp.eq.s32.totalorder %s18, 0
    %p66 = por %p64, %p65
    %s68 = sadd.s32 %s67, 1
    %p71 = scmp.eq.s32.totalorder %s12, 1
    %p72 = scmp.ne.s32.totalorder %s67, %s69
    %p73 = scmp.eq.s32.totalorder %s12, 0
    %p74 = por %p72, %p73
    %p75 = scmp.ne.s32.totalorder %s67, %s69
    %p76 = scmp.eq.s32.totalorder %s17, 1
    %p77 = por %p75, %p76
    %p78 = scmp.ne.s32.totalorder %s69, %s70
    %p79 = scmp.eq.s32.totalorder %s17, 0
    %p80 = por %p78, %p79
    %p81 = scmp.ne.s32.totalorder %s69, %s70
    %p82 = scmp.eq.s32.totalorder %s18, 1
    %p83 = por %p81, %p82
    %p85 = scmp.ne.s32.totalorder %s70, %s84
    %p86 = scmp.eq.s32.totalorder %s18, 0
    %p87 = por %p85, %p86
    %s89 = sadd.s32 %s88, 1
    %p92 = scmp.eq.s32.totalorder %s12, 1
    %p93 = scmp.ne.s32.totalorder %s88, %s90
    %p94 = scmp.eq.s32.totalorder %s12, 0
    %p95 = por %p93, %p94
    %p96 = scmp.ne.s32.totalorder %s88, %s90
    %p97 = scmp.eq.s32.totalorder %s17, 1
    %p98 = por %p96, %p97
    %p99 = scmp.ne.s32.totalorder %s90, %s91
    %p100 = scmp.eq.s32.totalorder %s17, 0
    %p101 = por %p99, %p100
    %p102 = scmp.ne.s32.totalorder %s90, %s91
    %p103 = scmp.eq.s32.totalorder %s18, 1
    %p104 = por %p102, %p103
    %p106 = scmp.ne.s32.totalorder %s91, %s105
    %p107 = scmp.eq.s32.totalorder %s18, 0
    %p108 = por %p106, %p107
    %s110 = sadd.s32 %s109, 1
    %p113 = scmp.eq.s32.totalorder %s12, 1
    %p114 = scmp.ne.s32.totalorder %s109, %s111
    %p115 = scmp.eq.s32.totalorder %s12, 0
    %p116 = por %p114, %p115
    %p117 = scmp.ne.s32.totalorder %s109, %s111
    %p118 = scmp.eq.s32.totalorder %s17, 1
    %p119 = por %p117, %p118
    %p120 = scmp.ne.s32.totalorder %s111, %s112
    %p121 = scmp.eq.s32.totalorder %s17, 0
    %p122 = por %p120, %p121
    %p123 = scmp.ne.s32.totalorder %s111, %s112
    %p124 = scmp.eq.s32.totalorder %s18, 1
    %p125 = por %p123, %p124
    %p127 = scmp.ne.s32.totalorder %s112, %s126
    %p128 = scmp.eq.s32.totalorder %s18, 0
    %p129 = por %p127, %p128
    %s131 = sadd.s32 %s130, 1
    %p134 = scmp.eq.s32.totalorder %s12, 1
    %p135 = scmp.ne.s32.totalorder %s130, %s132
    %p136 = scmp.eq.s32.totalorder %s12, 0
    %p137 = por %p135, %p136
    %p138 = scmp.ne.s32.totalorder %s130, %s132
    %p139 = scmp.eq.s32.totalorder %s17, 1
    %p140 = por %p138, %p139
    %p141 = scmp.ne.s32.totalorder %s132, %s133
    %p142 = scmp.eq.s32.totalorder %s17, 0
    %p143 = por %p141, %p142
    %p144 = scmp.ne.s32.totalorder %s132, %s133
    %p145 = scmp.eq.s32.totalorder %s18, 1
    %p146 = por %p144, %p145
    %p148 = scmp.ne.s32.totalorder %s133, %s147
    %p149 = scmp.eq.s32.totalorder %s18, 0
    %p150 = por %p148, %p149
    %s151 = ssub.s32 %s12, %s19
    %p152 = scmp.eq.s32.totalorder %s151, 0
    %s154 = sadd.s32 %s153, 1
    %s155 = scalar_select %p152, %s153, %s154
    %p158 = pneg %p152
    %p159 = scmp.eq.s32.totalorder %s12, 1
    %p160 = por %p158, %p159
    %p161 = scmp.ne.s32.totalorder %s153, %s156
    %p162 = scmp.eq.s32.totalorder %s12, 0
    %p163 = por %p161, %p162
    %p164 = scmp.ne.s32.totalorder %s153, %s156
    %p165 = scmp.eq.s32.totalorder %s17, 1
    %p166 = por %p164, %p165
    %p167 = scmp.ne.s32.totalorder %s156, %s157
    %p168 = scmp.eq.s32.totalorder %s17, 0
    %p169 = por %p167, %p168
    %p170 = scmp.ne.s32.totalorder %s156, %s157
    %p171 = scmp.eq.s32.totalorder %s18, 1
    %p172 = por %p170, %p171
    %p174 = scmp.ne.s32.totalorder %s157, %s173
    %p175 = scmp.eq.s32.totalorder %s18, 0
    %p176 = por %p174, %p175
    %p177 = scmp.le.s32.totalorder 1, %s12
    %p178 = scmp.lt.s32.totalorder %s12, 3
    %p179 = pnand %p177, %p178
    %p180 = pneg %p179
    // Predicated region
    $region9: #{block_forward.1} parent=5 // pred_check
      _
    $region10: #{block_forward.1} parent=5 // pred_check_branch
      %182 = sbr.rel (%p179) target = $region12
    $region11: #{block_forward.1} parent=5 // pred_region
      %s183 = ssub.s32 %s12, 1
      // Predicated region
      $region13: #{block_forward.1} parent=11 // pred_check
        %p184 = pneg %p59
      $region14: #{block_forward.1} parent=11 // pred_check_branch
        %186 = sbr.rel (%p184) target = $region16
      $region15: #{block_forward.1} parent=11 // pred_region
        _
      $region16: #{block_forward.1} parent=11 // pred_fallthru
        _
      // Predicated region
      $region17: #{block_forward.1} parent=11 // pred_check
        %p187 = pneg %p80
      $region18: #{block_forward.1} parent=11 // pred_check_branch
        %189 = sbr.rel (%p187) target = $region20
      $region19: #{block_forward.1} parent=11 // pred_region
        _
      $region20: #{block_forward.1} parent=11 // pred_fallthru
        _
      // Predicated region
      $region21: #{block_forward.1} parent=11 // pred_check
        %p190 = pneg %p101
      $region22: #{block_forward.1} parent=11 // pred_check_branch
        %192 = sbr.rel (%p190) target = $region24
      $region23: #{block_forward.1} parent=11 // pred_region
        _
      $region24: #{block_forward.1} parent=11 // pred_fallthru
        _
      // Predicated region
      $region25: #{block_forward.1} parent=11 // pred_check
        %p193 = pneg %p122
      $region26: #{block_forward.1} parent=11 // pred_check_branch
        %195 = sbr.rel (%p193) target = $region28
      $region27: #{block_forward.1} parent=11 // pred_region
        _
      $region28: #{block_forward.1} parent=11 // pred_fallthru
        _
      // Predicated region
      $region29: #{block_forward.1} parent=11 // pred_check
        %p196 = pneg %p143
      $region30: #{block_forward.1} parent=11 // pred_check_branch
        %198 = sbr.rel (%p196) target = $region32
      $region31: #{block_forward.1} parent=11 // pred_region
        _
      $region32: #{block_forward.1} parent=11 // pred_fallthru
        _
    $region12: #{block_forward.1} parent=5 // pred_fallthru
      _
    %p199 = scmp.lt.s32.totalorder %s12, 2
    // Predicated region
    $region33: #{block_forward.1} parent=5 // pred_check
      %p200 = pneg %p199
    $region34: #{block_forward.1} parent=5 // pred_check_branch
      %202 = sbr.rel (%p200) target = $region36
    $region35: #{block_forward.1} parent=5 // pred_region
      // Predicated region
      $region37: #{block_forward.1} parent=35 // pred_check
        %p203 = pneg %p32
      $region38: #{block_forward.1} parent=35 // pred_check_branch
        %205 = sbr.rel (%p203) target = $region40
      $region39: #{block_forward.1} parent=35 // pred_region
        %p206 = scmp.lt.s32.totalorder %s12, 1
        %s207 = scalar_select %p206, %s12, 1
        %s208 = smul.addr %s207, 2
        %s209 = smul.addr %s208, 4
        %s210 = scalar_lea.vmem %s0, %s209
      $region40: #{block_forward.1} parent=35 // pred_fallthru
        _
    $region36: #{block_forward.1} parent=5 // pred_fallthru
      _
    %p211 = scmp.le.s32.totalorder 1, %s12
    %p212 = scmp.lt.s32.totalorder %s12, 3
    %p213 = pnand %p211, %p212
    %p214 = pneg %p213
    // Predicated region
    $region41: #{block_forward.1} parent=5 // pred_check
      _
    $region42: #{block_forward.1} parent=5 // pred_check_branch
      %216 = sbr.rel (%p213) target = $region44
    $region43: #{block_forward.1} parent=5 // pred_region
      %s217 = ssub.s32 %s12, 1
      %p218 = scmp.lt.s32.totalorder %s17, 1
      %s219 = scalar_select %p218, %s17, 1
      %s220 = smul.addr %s219, 2
      %s221 = smul.addr %s220, 4
      %s222 = scalar_lea.vmem %s0, %s221
      %p223 = pneg %p38
      %p224 = pneg %p35
      %p225 = pneg %p59
      %p226 = pneg %p56
      %p227 = pneg %p80
      %p228 = pneg %p77
      %p229 = pneg %p101
      %p230 = pneg %p98
      %p231 = pneg %p122
      %p232 = pneg %p119
      %p233 = pneg %p143
      %p234 = pneg %p140
      %p235 = pneg %p169
      %p236 = pneg %p166
      %p237 = scmp.lt.s32.totalorder %s17, 1
      %s238 = scalar_select %p237, %s17, 1
      %s239 = smul.addr %s238, 2
      %s240 = smul.addr %s239, 4
      %s241 = scalar_lea.vmem %s6, %s240
      %p242 = scmp.lt.s32.totalorder %s17, 1
      %s243 = scalar_select %p242, %s17, 1
      %s244 = smul.addr %s243, 2
      %s245 = smul.addr %s244, 4
      %s246 = scalar_lea.vmem %s0, %s245
      %p247 = scmp.lt.s32.totalorder %s17, 1
      %s248 = scalar_select %p247, %s17, 1
      %s249 = smul.addr %s248, 2
      %s250 = smul.addr %s249, 4
      %s251 = scalar_lea.vmem %s6, %s250
      %v253 = vld [vmem:[%s246] sm:$0xff]
      %v254 = vld [vmem:[%s1] sm:$0xff]
      %v255 = vld [vmem:[%s1 + $0x8] sm:$0x11]
      %257 = vst [vmem:[#allocation1] ss:$2 sm:$0xff] %v253
      %v258 = vld.sshfl [vmem:[#allocation1] sm:$0xff pattern:$0x75316420]
      %v259 = vld.sshfl [vmem:[#allocation1 + $0x8] sm:$0xff pattern:$0x75316420]
      %v262 = vpack.c.bf16 %v259, %v258
      %v264 = vunpack.c.h.b16 %v262
      %v265 = vpack.c.b16 %v264, %v264
      %266 = vrot.lane.b32.xlu0 %v265, 17
      %v267 = vpop.permute.xlu0 %266
      %v268 = vunpack.c.l.b16 %v262
      %v269 = vpack.c.b16 %v268, %v268
      %270 = vrot.lane.b32.xlu0 %v269, 17
      %v271 = vpop.permute.xlu0 %270
      %vm272 = vcmask 138240
      %v273 = vsel %vm272, %v271, %v267
      %vm275 = vcmask 138240
      %v278 = vsel %vm275, %v267, %v271
      %v281 = vunpack.c.l.b16 %v254
      %v282 = vunpack.c.h.b16 %v254
      %v283 = vpack.c.b16 %v281, %v281
      %v284 = vpack.c.b16 %v282, %v282
      %v286 = vpack.i.b16 %v283, %v283
      %v288 = vperm.slane %v286, 0
      %v290 = vpack.i.b16 %v284, %v284
      %v292 = vperm.slane %v290, 0
      %v293 = vunpack.c.l.bf16 %v278
      %v294 = vunpack.c.l.bf16 %v273
      %v295 = vunpack.c.l.bf16 %v288
      %v296 = vunpack.c.l.bf16 %v292
      %v297 = vmul.f32 %v293, %v295
      %v298 = vmul.f32 %v294, %v296
      %v299 = vpack.c.bf16 %v298, %v297
      %300 = vrot.lane.b32.xlu0 %v265, 16
      %v301 = vpop.permute.xlu0 %300
      %302 = vrot.lane.b32.xlu0 %v269, 16
      %v303 = vpop.permute.xlu0 %302
      %vm304 = vcmask 130048
      %v305 = vsel %vm304, %v303, %v301
      %vm307 = vcmask 130048
      %v310 = vsel %vm307, %v301, %v303
      %v312 = vshrl.u32 %v283, 16
      %v313 = vpack.i.b16 %v312, %v312
      %v315 = vperm.slane %v313, 0
      %v316 = vshrl.u32 %v284, 16
      %v317 = vpack.i.b16 %v316, %v316
      %v319 = vperm.slane %v317, 0
      %v320 = vunpack.c.l.bf16 %v310
      %v321 = vunpack.c.l.bf16 %v305
      %v322 = vunpack.c.l.bf16 %v315
      %v323 = vunpack.c.l.bf16 %v319
      %v324 = vmul.f32 %v320, %v322
      %v325 = vmul.f32 %v321, %v323
      %v326 = vpack.c.bf16 %v325, %v324
      %327 = vrot.lane.b32.xlu0 %v265, 15
      %v328 = vpop.permute.xlu0 %327
      %329 = vrot.lane.b32.xlu0 %v269, 15
      %v330 = vpop.permute.xlu0 %329
      %vm331 = vcmask 121856
      %v332 = vsel %vm331, %v330, %v328
      %vm334 = vcmask 121856
      %v337 = vsel %vm334, %v328, %v330
      %v339 = vperm.slane %v286, 1
      %v340 = vperm.slane %v290, 1
      %v341 = vunpack.c.l.bf16 %v337
      %v342 = vunpack.c.l.bf16 %v332
      %v343 = vunpack.c.l.bf16 %v339
      %v344 = vunpack.c.l.bf16 %v340
      %v345 = vmul.f32 %v341, %v343
      %v346 = vmul.f32 %v342, %v344
      %v347 = vpack.c.bf16 %v346, %v345
      %348 = vrot.lane.b32.xlu0 %v265, 1
      %v349 = vpop.permute.xlu0 %348
      %350 = vrot.lane.b32.xlu0 %v269, 1
      %v351 = vpop.permute.xlu0 %350
      %vm352 = vcmask 7168
      %v353 = vsel %vm352, %v351, %v349
      %vm355 = vcmask 7168
      %v358 = vsel %vm355, %v349, %v351
      %v360 = vperm.slane %v313, 1
      %v361 = vperm.slane %v317, 1
      %v362 = vunpack.c.l.bf16 %v358
      %v363 = vunpack.c.l.bf16 %v353
      %v364 = vunpack.c.l.bf16 %v360
      %v365 = vunpack.c.l.bf16 %v361
      %v366 = vmul.f32 %v362, %v364
      %v367 = vmul.f32 %v363, %v365
      %v368 = vpack.c.bf16 %v367, %v366
      %369 = vrot.lane.b32.xlu0 %v269, 127
      %v370 = vpop.permute.xlu0 %369
      %371 = vrot.lane.b32.xlu0 %v265, 127
      %v372 = vpop.permute.xlu0 %371
      %vm373 = vcmask 1039360
      %v374 = vsel %vm373, %v370, %v372
      %vm376 = vcmask 1039360
      %v379 = vsel %vm376, %v372, %v370
      %v381 = vperm.slane %v313, 2
      %v382 = vperm.slane %v317, 2
      %v383 = vunpack.c.l.bf16 %v374
      %v384 = vunpack.c.l.bf16 %v379
      %v385 = vunpack.c.l.bf16 %v381
      %v386 = vunpack.c.l.bf16 %v382
      %v387 = vmul.f32 %v383, %v385
      %v388 = vmul.f32 %v384, %v386
      %v389 = vpack.c.bf16 %v388, %v387
      %390 = vrot.lane.b32.xlu0 %v269, 113
      %v391 = vpop.permute.xlu0 %390
      %392 = vrot.lane.b32.xlu0 %v265, 113
      %v393 = vpop.permute.xlu0 %392
      %vm394 = vcmask 924672
      %v395 = vsel %vm394, %v391, %v393
      %vm397 = vcmask 924672
      %v400 = vsel %vm397, %v393, %v391
      %v402 = vperm.slane %v286, 3
      %v403 = vperm.slane %v290, 3
      %v404 = vunpack.c.l.bf16 %v395
      %v405 = vunpack.c.l.bf16 %v400
      %v406 = vunpack.c.l.bf16 %v402
      %v407 = vunpack.c.l.bf16 %v403
      %v408 = vmul.f32 %v404, %v406
      %v409 = vmul.f32 %v405, %v407
      %v410 = vpack.c.bf16 %v409, %v408
      %411 = vrot.lane.b32.xlu0 %v269, 112
      %v412 = vpop.permute.xlu0 %411
      %413 = vrot.lane.b32.xlu0 %v265, 112
      %v414 = vpop.permute.xlu0 %413
      %vm415 = vcmask 916480
      %v416 = vsel %vm415, %v412, %v414
      %vm418 = vcmask 916480
      %v421 = vsel %vm418, %v414, %v412
      %v423 = vperm.slane %v313, 3
      %v424 = vperm.slane %v317, 3
      %v425 = vunpack.c.l.bf16 %v416
      %v426 = vunpack.c.l.bf16 %v421
      %v427 = vunpack.c.l.bf16 %v423
      %v428 = vunpack.c.l.bf16 %v424
      %v429 = vmul.f32 %v425, %v427
      %v430 = vmul.f32 %v426, %v428
      %v431 = vpack.c.bf16 %v430, %v429
      %432 = vrot.lane.b32.xlu0 %v269, 111
      %v433 = vpop.permute.xlu0 %432
      %434 = vrot.lane.b32.xlu0 %v265, 111
      %v435 = vpop.permute.xlu0 %434
      %vm436 = vcmask 908288
      %v437 = vsel %vm436, %v433, %v435
      %vm439 = vcmask 908288
      %v442 = vsel %vm439, %v435, %v433
      %v445 = vunpack.c.l.b16 %v255
      %v446 = vunpack.c.h.b16 %v255
      %v447 = vpack.c.b16 %v445, %v445
      %v448 = vpack.c.b16 %v446, %v446
      %v450 = vpack.i.b16 %v447, %v447
      %v452 = vperm.slane %v450, 0
      %v454 = vpack.i.b16 %v448, %v448
      %v456 = vperm.slane %v454, 0
      %v457 = vunpack.c.l.bf16 %v437
      %v458 = vunpack.c.l.bf16 %v442
      %v459 = vunpack.c.l.bf16 %v452
      %v460 = vunpack.c.l.bf16 %v456
      %v461 = vmul.f32 %v457, %v459
      %v462 = vmul.f32 %v458, %v460
      %v463 = vpack.c.bf16 %v462, %v461
      %v465 = vunpack.c.l.b16 %v299
      %v466 = vunpack.c.h.b16 %v299
      %v467 = vpack.c.b16 %v465, %v465
      %v468 = vpack.c.b16 %v466, %v466
      %v470 = vunpack.c.l.b16 %v326
      %v471 = vunpack.c.h.b16 %v326
      %v472 = vpack.c.b16 %v470, %v470
      %v473 = vpack.c.b16 %v471, %v471
      %v474 = vrot.slane %v472, 6
      %v475 = vrot.slane %v473, 6
      %v477 = vunpack.c.l.b16 %v347
      %v478 = vunpack.c.h.b16 %v347
      %v479 = vpack.c.b16 %v477, %v477
      %v480 = vpack.c.b16 %v478, %v478
      %v482 = vunpack.c.l.b16 %v368
      %v483 = vunpack.c.h.b16 %v368
      %v484 = vpack.c.b16 %v482, %v482
      %v485 = vpack.c.b16 %v483, %v483
      %v486 = vrot.slane %v484, 2
      %v487 = vrot.slane %v485, 2
      %v489 = vunpack.c.l.b16 %v389
      %v490 = vunpack.c.h.b16 %v389
      %v491 = vpack.c.b16 %v489, %v489
      %v492 = vpack.c.b16 %v490, %v490
      %v493 = vrot.slane %v491, 6
      %v494 = vrot.slane %v492, 6
      %v496 = vunpack.c.l.b16 %v410
      %v497 = vunpack.c.h.b16 %v410
      %v498 = vpack.c.b16 %v496, %v496
      %v499 = vpack.c.b16 %v497, %v497
      %v501 = vunpack.c.l.b16 %v431
      %v502 = vunpack.c.h.b16 %v431
      %v503 = vpack.c.b16 %v501, %v501
      %v504 = vpack.c.b16 %v502, %v502
      %v505 = vrot.slane %v503, 2
      %v506 = vrot.slane %v504, 2
      %v508 = vunpack.c.l.b16 %v463
      %v509 = vunpack.c.h.b16 %v463
      %v510 = vpack.c.b16 %v508, %v508
      %v511 = vpack.c.b16 %v509, %v509
      %vm512 = vcmask 1041408
      %v515 = vsel %vm512, %v467, %v474
      %v518 = vsel %vm512, %v468, %v475
      %vm519 = vcmask 1043456
      %v521 = vsel %vm519, %v515, %v479
      %v523 = vsel %vm519, %v518, %v480
      %vm524 = vcmask 1045504
      %v526 = vsel %vm524, %v521, %v486
      %v529 = vsel %vm524, %v523, %v487
      %v533 = vsel %vm512, %v269, %v493
      %v536 = vsel %vm512, %v265, %v494
      %v538 = vsel %vm519, %v533, %v498
      %v540 = vsel %vm519, %v536, %v499
      %v542 = vsel %vm524, %v538, %v505
      %v545 = vsel %vm524, %v540, %v506
      %v547 = vld [vmem:[%s2] sm:$0xf]
      %v548 = vld [vmem:[%s3] sm:$0xff]
      %550 = vset.pattern.permute.xlu0 0
      %551 = vperm.xlu0 %550, %v548
      %v552 = vpop.permute.xlu0 %551
      %vm554 = vcmask 293888
      %v556 = vsel %vm554, %v547, 0
      %v559 = vsel %vm512, %v510, 0
      %v562 = vsel %vm512, %v511, 0
      %564 = vmatpush.bf16.msra.mxu0 0
      %565 = vmatpush.bf16.msra.mxu0 0
      %566 = vmatpush.bf16.msra.mxu0 0
      %567 = vmatpush.bf16.msra.mxu0 0
      %568 = vmatpush.bf16.msra.mxu0 0
      %569 = vmatpush.bf16.msra.mxu0 %v559
      %570 = vmatpush.bf16.msra.mxu0 %v542
      %571 = vmatpush.bf16.msra.mxu0 %v526
      %572 = vmatmul.bf16.gmra.mxu0 %v556
      %v573 = vpop.f32.mrf.mxu0
      %v574 = vadd.f32 %v552, %v573
      %v575 = vpop.f32.mrf.mxu0
      %576 = vdwg.mxu0
      %577 = vmatpush.bf16.msra.mxu0 0
      %578 = vmatpush.bf16.msra.mxu0 0
      %579 = vmatpush.bf16.msra.mxu0 0
      %580 = vmatpush.bf16.msra.mxu0 0
      %581 = vmatpush.bf16.msra.mxu0 0
      %582 = vmatpush.bf16.msra.mxu0 %v562
      %583 = vmatpush.bf16.msra.mxu0 %v545
      %584 = vmatpush.bf16.msra.mxu0 %v529
      %585 = vmatmul.bf16.gmra.mxu0 %v556
      %v586 = vpop.f32.mrf.mxu0
      %v587 = vadd.f32 %v552, %v586
      %v588 = vpop.f32.mrf.mxu0
      %589 = vdwg.mxu0
      %v590 = vmax.f32 %v574, 0.0
      %v591 = vmax.f32 %v587, 0.0
      %v592 = vpack.c.bf16 %v591, %v590
      %v594 = vunpack.c.h.b16 %v592
      %v595 = vpack.c.b16 %v594, %v594
      %596 = vrot.lane.b32.xlu0 %v595, 17
      %v597 = vpop.permute.xlu0 %596
      %v598 = vunpack.c.l.b16 %v592
      %v599 = vpack.c.b16 %v598, %v598
      %600 = vrot.lane.b32.xlu0 %v599, 17
      %v601 = vpop.permute.xlu0 %600
      %v602 = vsel %vm272, %v601, %v597
      %v606 = vsel %vm275, %v597, %v601
      %v608 = vunpack.c.l.bf16 %v606
      %v609 = vunpack.c.l.bf16 %v602
      %v610 = vmul.f32 %v608, %v295
      %v611 = vmul.f32 %v609, %v296
      %v612 = vpack.c.bf16 %v611, %v610
      %613 = vrot.lane.b32.xlu0 %v595, 16
      %v614 = vpop.permute.xlu0 %613
      %615 = vrot.lane.b32.xlu0 %v599, 16
      %v616 = vpop.permute.xlu0 %615
      %v617 = vsel %vm304, %v616, %v614
      %v621 = vsel %vm307, %v614, %v616
      %v623 = vunpack.c.l.bf16 %v621
      %v624 = vunpack.c.l.bf16 %v617
      %v625 = vmul.f32 %v623, %v322
      %v626 = vmul.f32 %v624, %v323
      %v627 = vpack.c.bf16 %v626, %v625
      %628 = vrot.lane.b32.xlu0 %v595, 15
      %v629 = vpop.permute.xlu0 %628
      %630 = vrot.lane.b32.xlu0 %v599, 15
      %v631 = vpop.permute.xlu0 %630
      %v632 = vsel %vm331, %v631, %v629
      %v636 = vsel %vm334, %v629, %v631
      %v638 = vunpack.c.l.bf16 %v636
      %v639 = vunpack.c.l.bf16 %v632
      %v640 = vmul.f32 %v638, %v343
      %v641 = vmul.f32 %v639, %v344
      %v642 = vpack.c.bf16 %v641, %v640
      %643 = vrot.lane.b32.xlu0 %v595, 1
      %v644 = vpop.permute.xlu0 %643
      %645 = vrot.lane.b32.xlu0 %v599, 1
      %v646 = vpop.permute.xlu0 %645
      %v647 = vsel %vm352, %v646, %v644
      %v651 = vsel %vm355, %v644, %v646
      %v653 = vunpack.c.l.bf16 %v651
      %v654 = vunpack.c.l.bf16 %v647
      %v655 = vmul.f32 %v653, %v364
      %v656 = vmul.f32 %v654, %v365
      %v657 = vpack.c.bf16 %v656, %v655
      %658 = vrot.lane.b32.xlu0 %v599, 127
      %v659 = vpop.permute.xlu0 %658
      %660 = vrot.lane.b32.xlu0 %v595, 127
      %v661 = vpop.permute.xlu0 %660
      %v662 = vsel %vm373, %v659, %v661
      %v666 = vsel %vm376, %v661, %v659
      %v668 = vunpack.c.l.bf16 %v662
      %v669 = vunpack.c.l.bf16 %v666
      %v670 = vmul.f32 %v668, %v385
      %v671 = vmul.f32 %v669, %v386
      %v672 = vpack.c.bf16 %v671, %v670
      %673 = vrot.lane.b32.xlu0 %v599, 113
      %v674 = vpop.permute.xlu0 %673
      %675 = vrot.lane.b32.xlu0 %v595, 113
      %v676 = vpop.permute.xlu0 %675
      %v677 = vsel %vm394, %v674, %v676
      %v681 = vsel %vm397, %v676, %v674
      %v683 = vunpack.c.l.bf16 %v677
      %v684 = vunpack.c.l.bf16 %v681
      %v685 = vmul.f32 %v683, %v406
      %v686 = vmul.f32 %v684, %v407
      %v687 = vpack.c.bf16 %v686, %v685
      %688 = vrot.lane.b32.xlu0 %v599, 112
      %v689 = vpop.permute.xlu0 %688
      %690 = vrot.lane.b32.xlu0 %v595, 112
      %v691 = vpop.permute.xlu0 %690
      %v692 = vsel %vm415, %v689, %v691
      %v696 = vsel %vm418, %v691, %v689
      %v698 = vunpack.c.l.bf16 %v692
      %v699 = vunpack.c.l.bf16 %v696
      %v700 = vmul.f32 %v698, %v427
      %v701 = vmul.f32 %v699, %v428
      %v702 = vpack.c.bf16 %v701, %v700
      %703 = vrot.lane.b32.xlu0 %v599, 111
      %v704 = vpop.permute.xlu0 %703
      %705 = vrot.lane.b32.xlu0 %v595, 111
      %v706 = vpop.permute.xlu0 %705
      %v707 = vsel %vm436, %v704, %v706
      %v711 = vsel %vm439, %v706, %v704
      %v713 = vunpack.c.l.bf16 %v707
      %v714 = vunpack.c.l.bf16 %v711
      %v715 = vmul.f32 %v713, %v459
      %v716 = vmul.f32 %v714, %v460
      %v717 = vpack.c.bf16 %v716, %v715
      %v719 = vunpack.c.l.b16 %v612
      %v720 = vunpack.c.h.b16 %v612
      %v721 = vpack.c.b16 %v719, %v719
      %v722 = vpack.c.b16 %v720, %v720
      %v724 = vunpack.c.l.b16 %v627
      %v725 = vunpack.c.h.b16 %v627
      %v726 = vpack.c.b16 %v724, %v724
      %v727 = vpack.c.b16 %v725, %v725
      %v729 = vunpack.c.l.b16 %v642
      %v730 = vunpack.c.h.b16 %v642
      %v731 = vpack.c.b16 %v729, %v729
      %v732 = vpack.c.b16 %v730, %v730
      %v734 = vunpack.c.l.b16 %v657
      %v735 = vunpack.c.h.b16 %v657
      %v736 = vpack.c.b16 %v734, %v734
      %v737 = vpack.c.b16 %v735, %v735
      %v739 = vunpack.c.l.b16 %v672
      %v740 = vunpack.c.h.b16 %v672
      %v741 = vpack.c.b16 %v739, %v739
      %v742 = vpack.c.b16 %v740, %v740
      %v744 = vunpack.c.l.b16 %v687
      %v745 = vunpack.c.h.b16 %v687
      %v746 = vpack.c.b16 %v744, %v744
      %v747 = vpack.c.b16 %v745, %v745
      %v749 = vunpack.c.l.b16 %v702
      %v750 = vunpack.c.h.b16 %v702
      %v751 = vpack.c.b16 %v749, %v749
      %v752 = vpack.c.b16 %v750, %v750
      %v754 = vunpack.c.l.b16 %v717
      %v755 = vunpack.c.h.b16 %v717
      %v756 = vpack.c.b16 %v754, %v754
      %v757 = vpack.c.b16 %v755, %v755
      %v760 = vsel %vm519, %v721, %v726
      %v764 = vsel %vm519, %v722, %v727
      %v768 = vsel %vm519, %v731, %v736
      %v772 = vsel %vm519, %v732, %v737
      %v776 = vsel %vm519, %v599, %v741
      %v780 = vsel %vm519, %v595, %v742
      %v784 = vsel %vm519, %v746, %v751
      %v788 = vsel %vm519, %v747, %v752
      %v790 = vld [vmem:[%s4] sm:$0x3]
      %v791 = vld [vmem:[%s5] sm:$0xf]
      %793 = vset.pattern.permute.xlu0 0
      %794 = vperm.xlu0 %793, %v791
      %v795 = vpop.permute.xlu0 %794
      %vm797 = vcmask 588800
      %v799 = vsel %vm797, %v790, 0
      %v802 = vsel %vm519, %v756, 0
      %v805 = vsel %vm519, %v757, 0
      %807 = vmatpush.bf16.msra.mxu0 0
      %808 = vmatpush.bf16.msra.mxu0 0
      %809 = vmatpush.bf16.msra.mxu0 0
      %810 = vmatpush.bf16.msra.mxu0 %v802
      %811 = vmatpush.bf16.msra.mxu0 %v784
      %812 = vmatpush.bf16.msra.mxu0 %v776
      %813 = vmatpush.bf16.msra.mxu0 %v768
      %814 = vmatpush.bf16.msra.mxu0 %v760
      %815 = vmatmul.bf16.gmra.mxu0 %v799
      %v816 = vpop.f32.mrf.mxu0
      %v817 = vadd.f32 %v795, %v816
      %v818 = vpop.f32.mrf.mxu0
      %819 = vdwg.mxu0
      %820 = vmatpush.bf16.msra.mxu0 0
      %821 = vmatpush.bf16.msra.mxu0 0
      %822 = vmatpush.bf16.msra.mxu0 0
      %823 = vmatpush.bf16.msra.mxu0 %v805
      %824 = vmatpush.bf16.msra.mxu0 %v788
      %825 = vmatpush.bf16.msra.mxu0 %v780
      %826 = vmatpush.bf16.msra.mxu0 %v772
      %827 = vmatpush.bf16.msra.mxu0 %v764
      %828 = vmatmul.bf16.gmra.mxu0 %v799
      %v829 = vpop.f32.mrf.mxu0
      %v830 = vadd.f32 %v795, %v829
      %v831 = vpop.f32.mrf.mxu0
      %832 = vdwg.mxu0
      %833 = vst [vmem:[#allocation1] ss:$2 sm:$0xff] %v253
      %v834 = vld.sshfl [vmem:[#allocation1] sm:$0xff pattern:$0x75316420]
      %v835 = vld.sshfl [vmem:[#allocation1 + $0x8] sm:$0xff pattern:$0x75316420]
      %v838 = vadd.f32 %v817, %v834
      %v839 = vadd.f32 %v830, %v835
      %v842 = vrot.slane %v839, 4
      %v843 = vsel %vm519, %v838, %v842
      %845 = vst [vmem:[%s251] sm:$0xff] %v843
      %p846 = scmp.lt.s32.totalorder %s17, 1
      %s847 = scalar_select %p846, %s17, 1
      %s848 = smul.addr %s847, 2
      %s849 = smul.addr %s848, 4
      %s850 = scalar_lea.vmem %s6, %s849
      // Predicated region
      $region45: #{block_forward.1} parent=43 // pred_check
        %p851 = pneg %p166
      $region46: #{block_forward.1} parent=43 // pred_check_branch
        %853 = sbr.rel (%p851) target = $region48
      $region47: #{block_forward.1} parent=43 // pred_region
        _
      $region48: #{block_forward.1} parent=43 // pred_fallthru
        _
    $region44: #{block_forward.1} parent=5 // pred_fallthru
      _
    %p854 = scmp.le.s32.totalorder 2, %s12
    // Predicated region
    $region49: #{block_forward.1} parent=5 // pred_check
      %p855 = pneg %p854
    $region50: #{block_forward.1} parent=5 // pred_check_branch
      %857 = sbr.rel (%p855) target = $region52
    $region51: #{block_forward.1} parent=5 // pred_region
      %s858 = ssub.s32 %s12, 2
      // Predicated region
      $region53: #{block_forward.1} parent=51 // pred_check
        %p859 = pneg %p172
      $region54: #{block_forward.1} parent=51 // pred_check_branch
        %861 = sbr.rel (%p859) target = $region56
      $region55: #{block_forward.1} parent=51 // pred_region
        %p862 = scmp.lt.s32.totalorder %s18, 1
        %s863 = scalar_select %p862, %s18, 1
        %s864 = smul.addr %s863, 2
        %s865 = smul.addr %s864, 4
        %s866 = scalar_lea.vmem %s6, %s865
      $region56: #{block_forward.1} parent=51 // pred_fallthru
        _
    $region52: #{block_forward.1} parent=5 // pred_fallthru
      _
  $region6: #{block_forward.1} parent=0 // loop_footer
    %s16 = sadd.s32 1, %s12
  $region7: #{block_forward.1} parent=0 // loop_footer_branch
    %11 = sbr.rel target = $region3
  $region8: #{block_forward.1} parent=0 // loop_exit
    _

</llo_original>
